<compile_context>
chip_gen: v7x
topology: tpu7x:2x2x1
jax: 0.10.0
libtpu: 0.0.40
codegen_flags: <defaults>
</compile_context>

<pallas_src>
import functools

import jax
import jax.numpy as jnp
from jax.experimental import pallas as pl
from jax.experimental.pallas import tpu as pltpu


def _focal_loss_kernel(x_ref, t_ref, out_ref, acc_loss_ref, acc_cnt_ref, *,
                       gamma, ignore_index, n_rows, row_tile, blocks_per_split):
    i = pl.program_id(1)

    @pl.when(i == 0)
    def _():
        acc_loss_ref[...] = jnp.zeros_like(acc_loss_ref)
        acc_cnt_ref[...] = jnp.zeros_like(acc_cnt_ref)

    x = x_ref[...].astype(jnp.float32)             # [TN, C]
    t = t_ref[...]                                  # [TN, 1] int32

    # Numerically-stable log-softmax along the class (lane) axis.
    m = jnp.max(x, axis=-1, keepdims=True)
    z = x - m
    lse = jnp.log(jnp.sum(jnp.exp(z), axis=-1, keepdims=True))
    log_pt = z - lse                                # [TN, C]

    # Gather the target-class log-prob FIRST (one-hot via iota compare; no
    # dynamic gather on TPU), then do the focal modulation per-row only.
    col = jax.lax.broadcasted_iota(jnp.int32, log_pt.shape, 1)
    picked = jnp.sum(jnp.where(col == t, log_pt, 0.0),
                     axis=-1, keepdims=True)        # [TN, 1]

    pt_t = jnp.exp(picked)                          # [TN, 1] (per-row EUP only)
    q = jnp.maximum(1.0 - pt_t, 0.0)                # guard tiny negative round-off
    g_int = int(gamma)
    if float(gamma) == float(g_int) and g_int >= 0:
        focal = jnp.ones_like(q)                    # integer gamma: VPU multiplies
        for _ in range(g_int):
            focal = focal * q
    else:
        focal = q ** gamma                          # non-integer gamma: EUP pow

    # Validity mask: ignore_index rows AND the ragged tail (rows >= N) of the
    # last (possibly clamped / duplicated) block.
    blk = pl.program_id(0) * blocks_per_split + i
    row_ids = blk * row_tile + jax.lax.broadcasted_iota(
        jnp.int32, (row_tile, 1), 0)
    valid = (t != ignore_index) & (row_ids < n_rows)

    loss_i = jnp.where(valid, -(focal * picked), 0.0)   # [TN, 1]

    # Per-row partial sums (plain VALU adds); the full reduce is deferred to
    # the epilogue instead of a per-step scalar reduction.
    acc_loss_ref[...] += loss_i
    acc_cnt_ref[...] += valid.astype(jnp.float32)

    @pl.when(i == pl.num_programs(1) - 1)
    def _():
        total = jnp.sum(acc_loss_ref[...])
        count = jnp.sum(acc_cnt_ref[...])
        lane = jax.lax.broadcasted_iota(jnp.int32, (1, 8, 128), 2)
        out_ref[...] = jnp.where(lane == 0, total,
                                 jnp.where(lane == 1, count, 0.0))


def _pick_row_tile(n_rows, n_cols):
    """Pick rows per block so ~10 live (row_tile, lane-padded-C) f32 buffers
    (double-buffered inputs + log-softmax temporaries + accumulators) stay
    around ~20 MiB, which fits scoped VMEM on v5e / v6e / v7x."""
    lane_cols = ((max(int(n_cols), 1) + 127) // 128) * 128
    budget_bytes = 20 * 1024 * 1024
    per_row_bytes = lane_cols * 4 * 10
    rt = budget_bytes // per_row_bytes
    rt = max(8, min(2048, (rt // 8) * 8))
    rt = min(rt, ((int(n_rows) + 7) // 8) * 8)      # no point tiling past N
    return max(8, rt)


def focal_loss(logits, target, *, gamma=2.0, reduction="mean",
               ignore_index=-100, row_tile=None):
    """logits: [N, C] (any float dtype), target: [N] int.

    Mirrors FocalLoss.forward with weight=None; reduction in {'mean', 'sum'}.
    reduction='mean' with zero valid rows returns NaN (0/0), same as PyTorch.
    """
    N, C = logits.shape
    assert target.shape == (N,)

    if row_tile is None:
        row_tile = _pick_row_tile(N, C)
    row_tile = max(8, (int(row_tile) // 8) * 8)

    blocks = -(-N // row_tile)                      # cdiv(N, row_tile)
    num_splits = 2 if blocks >= 2 else 1            # v7x megacore row split
    bpc = -(-blocks // num_splits)                  # blocks per split

    # Logical block for grid step (c, i); clamp so the DMA window stays inside
    # the arrays (duplicated / partial blocks are masked in-kernel by row id).
    def _blk_map(c, i):
        return jnp.minimum(c * bpc + i, blocks - 1)

    kernel = functools.partial(
        _focal_loss_kernel, gamma=float(gamma), ignore_index=int(ignore_index),
        n_rows=N, row_tile=row_tile, blocks_per_split=bpc)

    target2d = target.astype(jnp.int32).reshape(N, 1)

    sums = pl.pallas_call(
        kernel,
        out_shape=jax.ShapeDtypeStruct((num_splits, 8, 128), jnp.float32),
        grid_spec=pltpu.PrefetchScalarGridSpec(
            num_scalar_prefetch=0,
            grid=(num_splits, bpc),
            in_specs=[
                pl.BlockSpec((row_tile, C), lambda c, i: (_blk_map(c, i), 0)),
                pl.BlockSpec((row_tile, 1), lambda c, i: (_blk_map(c, i), 0)),
            ],
            out_specs=pl.BlockSpec((1, 8, 128), lambda c, i: (c, 0, 0)),
            scratch_shapes=[pltpu.VMEM((row_tile, 1), jnp.float32),
                            pltpu.VMEM((row_tile, 1), jnp.float32)],
        ),
        compiler_params=pltpu.CompilerParams(
            dimension_semantics=("parallel", "arbitrary"),
            vmem_limit_bytes=32 * 1024 * 1024,
        ),
    )(logits, target2d)

    total = jnp.sum(sums[:, 0, 0])
    count = jnp.sum(sums[:, 0, 1])
    if reduction == "mean":
        return total / count
    elif reduction == "sum":
        return total
    else:
        # TODO(synk): reduction='none' would need a per-row output kernel.
        raise NotImplementedError("reduction='none' not implemented")


def _focal_loss_ref(logits, target, *, gamma=2.0, ignore_index=-100):
    """Plain-JAX reference matching the PyTorch module (reduction='mean')."""
    log_pt = jax.nn.log_softmax(logits.astype(jnp.float32), axis=1)
    pt = jnp.exp(log_pt)
    mod = (1.0 - pt) ** gamma * log_pt
    valid = target != ignore_index
    safe_t = jnp.where(valid, target, 0)
    picked = jnp.take_along_axis(mod, safe_t[:, None], axis=1)[:, 0]
    loss_i = jnp.where(valid, -picked, 0.0)
    return jnp.sum(loss_i) / jnp.sum(valid.astype(jnp.float32))


if __name__ == "__main__":
    key = jax.random.PRNGKey(0)
    k1, k2, k3, k4 = jax.random.split(key, 4)

    # Case 1: small [N, C] = [16, 10] (single block, single split).
    N, C = 16, 10
    logits = jax.random.normal(k1, (N, C), dtype=jnp.float32)
    target = jax.random.randint(k2, (N,), 0, C, dtype=jnp.int32)
    target = target.at[3].set(-100)            # exercise ignore_index
    loss = jax.block_until_ready(focal_loss(logits, target, gamma=2.0))
    ref = _focal_loss_ref(logits, target, gamma=2.0)
    assert jnp.allclose(loss, ref, rtol=1e-5, atol=1e-5), (loss, ref)

    # Case 2: ragged N=37 with a small forced tile -> multi-block grid,
    # 2-way split, clamped tail block, in-kernel tail masking.
    N2, C2 = 37, 10
    logits2 = jax.random.normal(k3, (N2, C2), dtype=jnp.float32)
    target2 = jax.random.randint(k4, (N2,), 0, C2, dtype=jnp.int32)
    target2 = target2.at[0].set(-100)
    loss2 = jax.block_until_ready(focal_loss(logits2, target2, gamma=2.0,
                                             row_tile=8))
    ref2 = _focal_loss_ref(logits2, target2, gamma=2.0)
    assert jnp.allclose(loss2, ref2, rtol=1e-5, atol=1e-5), (loss2, ref2)

    print("KERNEL_OK")
</pallas_src>

<mosaic_0001>
module attributes {stable_mosaic.version = 11 : i64} {
  func.func @_focal_loss_kernel(%arg0: i32, %arg1: i32, %arg2: memref<16x10xf32, #tpu.memory_space<vmem>>, %arg3: memref<16x1xi32, #tpu.memory_space<vmem>>, %arg4: memref<1x8x128xf32, #tpu.memory_space<vmem>>, %arg5: memref<16x1xf32, #tpu.memory_space<vmem>>, %arg6: memref<16x1xf32, #tpu.memory_space<vmem>>) attributes {dimension_semantics = [#tpu.dimension_semantics<parallel>, #tpu.dimension_semantics<arbitrary>], iteration_bounds = array<i64: 1, 1>, scalar_prefetch = 0 : i64, scratch_operands = 2 : i64, tpu.core_type = #tpu.core_type<tc>, window_params = [{transform_indices = @transform_0, window_bounds = array<i64: 16, 10>}, {transform_indices = @transform_1, window_bounds = array<i64: 16, 1>}, {transform_indices = @transform_2, window_bounds = array<i64: 1, 8, 128>}]} {
    %c0_i32 = arith.constant 0 : i32
    %0 = arith.cmpi eq, %arg1, %c0_i32 : i32
    %1 = arith.extui %0 : i1 to i32
    %c0_i32_0 = arith.constant 0 : i32
    %2 = arith.cmpi ne, %1, %c0_i32_0 : i32
    scf.if %2 {
      %cst_23 = arith.constant 0.000000e+00 : f32
      %57 = vector.broadcast %cst_23 : f32 to vector<16x1xf32>
      %c0_24 = arith.constant 0 : index
      %c0_25 = arith.constant 0 : index
      %58 = vector.load %arg5[%c0_24, %c0_25] : memref<16x1xf32, #tpu.memory_space<vmem>>, vector<16x1xf32>
      tpu.vector_store %arg5[%c0_24, %c0_25], %57 {strides = array<i32>} : memref<16x1xf32, #tpu.memory_space<vmem>>, vector<16x1xf32>,
      %cst_26 = arith.constant 0.000000e+00 : f32
      %59 = vector.broadcast %cst_26 : f32 to vector<16x1xf32>
      %c0_27 = arith.constant 0 : index
      %c0_28 = arith.constant 0 : index
      %60 = vector.load %arg6[%c0_27, %c0_28] : memref<16x1xf32, #tpu.memory_space<vmem>>, vector<16x1xf32>
      tpu.vector_store %arg6[%c0_27, %c0_28], %59 {strides = array<i32>} : memref<16x1xf32, #tpu.memory_space<vmem>>, vector<16x1xf32>,
    } else {
    }
    %c0 = arith.constant 0 : index
    %c0_1 = arith.constant 0 : index
    %3 = vector.load %arg2[%c0, %c0_1] : memref<16x10xf32, #tpu.memory_space<vmem>>, vector<16x10xf32>
    %c0_2 = arith.constant 0 : index
    %c0_3 = arith.constant 0 : index
    %4 = vector.load %arg3[%c0_2, %c0_3] : memref<16x1xi32, #tpu.memory_space<vmem>>, vector<16x1xi32>
    %cst = arith.constant dense<0xFF800000> : vector<16xf32>
    %5 = vector.multi_reduction <maximumf>, %3, %cst [1] : vector<16x10xf32> to vector<16xf32>
    %6 = vector.shape_cast %5 : vector<16xf32> to vector<16x1xf32>
    %7 = vector.broadcast %6 : vector<16x1xf32> to vector<16x10xf32>
    %8 = arith.subf %3, %7 : vector<16x10xf32>
    %9 = math.exp %8 : vector<16x10xf32>
    %cst_4 = arith.constant dense<0.000000e+00> : vector<16xf32>
    %10 = vector.multi_reduction <add>, %9, %cst_4 [1] : vector<16x10xf32> to vector<16xf32>
    %11 = vector.shape_cast %10 : vector<16xf32> to vector<16x1xf32>
    %12 = math.log %11 : vector<16x1xf32>
    %13 = vector.broadcast %12 : vector<16x1xf32> to vector<16x10xf32>
    %14 = arith.subf %8, %13 : vector<16x10xf32>
    %15 = tpu.iota {dimensions = array<i32: 1>} : vector<16x10xi32>
    %16 = vector.broadcast %4 : vector<16x1xi32> to vector<16x10xi32>
    %17 = arith.cmpi eq, %15, %16 : vector<16x10xi32>
    %cst_5 = arith.constant 0.000000e+00 : f32
    %18 = vector.broadcast %cst_5 : f32 to vector<16x10xf32>
    %19 = arith.select %17, %14, %18 : vector<16x10xi1>, vector<16x10xf32>
    %cst_6 = arith.constant dense<0.000000e+00> : vector<16xf32>
    %20 = vector.multi_reduction <add>, %19, %cst_6 [1] : vector<16x10xf32> to vector<16xf32>
    %21 = vector.shape_cast %20 : vector<16xf32> to vector<16x1xf32>
    %22 = math.exp %21 : vector<16x1xf32>
    %cst_7 = arith.constant 1.000000e+00 : f32
    %23 = vector.broadcast %cst_7 : f32 to vector<16x1xf32>
    %24 = arith.subf %23, %22 : vector<16x1xf32>
    %cst_8 = arith.constant 0.000000e+00 : f32
    %25 = vector.broadcast %cst_8 : f32 to vector<16x1xf32>
    %26 = arith.maximumf %24, %25 : vector<16x1xf32>
    %cst_9 = arith.constant 1.000000e+00 : f32
    %27 = vector.broadcast %cst_9 : f32 to vector<16x1xf32>
    %28 = arith.mulf %27, %26 : vector<16x1xf32>
    %29 = arith.mulf %28, %26 : vector<16x1xf32>
    %c1_i32 = arith.constant 1 : i32
    %30 = arith.muli %arg0, %c1_i32 : i32
    %31 = arith.addi %30, %arg1 : i32
    %c16_i32 = arith.constant 16 : i32
    %32 = arith.muli %31, %c16_i32 : i32
    %33 = tpu.iota {dimensions = array<i32: 0>} : vector<16x1xi32>
    %34 = vector.broadcast %32 : i32 to vector<16x1xi32>
    %35 = arith.addi %34, %33 : vector<16x1xi32>
    %c-100_i32 = arith.constant -100 : i32
    %36 = vector.broadcast %c-100_i32 : i32 to vector<16x1xi32>
    %37 = arith.cmpi ne, %4, %36 : vector<16x1xi32>
    %c16_i32_10 = arith.constant 16 : i32
    %38 = vector.broadcast %c16_i32_10 : i32 to vector<16x1xi32>
    %39 = arith.cmpi slt, %35, %38 : vector<16x1xi32>
    %40 = arith.andi %37, %39 : vector<16x1xi1>
    %41 = arith.mulf %29, %21 : vector<16x1xf32>
    %cst_11 = arith.constant 0.000000e+00 : f32
    %42 = vector.broadcast %cst_11 : f32 to vector<16x1xf32>
    %43 = arith.subf %42, %41 : vector<16x1xf32>
    %cst_12 = arith.constant 0.000000e+00 : f32
    %44 = vector.broadcast %cst_12 : f32 to vector<16x1xf32>
    %45 = arith.select %40, %43, %44 : vector<16x1xi1>, vector<16x1xf32>
    %c0_13 = arith.constant 0 : index
    %c0_14 = arith.constant 0 : index
    %46 = vector.load %arg5[%c0_13, %c0_14] : memref<16x1xf32, #tpu.memory_space<vmem>>, vector<16x1xf32>
    %47 = arith.addf %46, %45 : vector<16x1xf32>
    %c0_15 = arith.constant 0 : index
    %c0_16 = arith.constant 0 : index
    %48 = vector.load %arg5[%c0_15, %c0_16] : memref<16x1xf32, #tpu.memory_space<vmem>>, vector<16x1xf32>
    tpu.vector_store %arg5[%c0_15, %c0_16], %47 {strides = array<i32>} : memref<16x1xf32, #tpu.memory_space<vmem>>, vector<16x1xf32>,
    %c0_17 = arith.constant 0 : index
    %c0_18 = arith.constant 0 : index
    %49 = vector.load %arg6[%c0_17, %c0_18] : memref<16x1xf32, #tpu.memory_space<vmem>>, vector<16x1xf32>
    %50 = arith.extui %40 : vector<16x1xi1> to vector<16x1xi32>
    %51 = arith.sitofp %50 : vector<16x1xi32> to vector<16x1xf32>
    %52 = arith.addf %49, %51 : vector<16x1xf32>
    %c0_19 = arith.constant 0 : index
    %c0_20 = arith.constant 0 : index
    %53 = vector.load %arg6[%c0_19, %c0_20] : memref<16x1xf32, #tpu.memory_space<vmem>>, vector<16x1xf32>
    tpu.vector_store %arg6[%c0_19, %c0_20], %52 {strides = array<i32>} : memref<16x1xf32, #tpu.memory_space<vmem>>, vector<16x1xf32>,
    %c0_i32_21 = arith.constant 0 : i32
    %54 = arith.cmpi eq, %arg1, %c0_i32_21 : i32
    %55 = arith.extui %54 : i1 to i32
    %c0_i32_22 = arith.constant 0 : i32
    %56 = arith.cmpi ne, %55, %c0_i32_22 : i32
    scf.if %56 {
      %c0_23 = arith.constant 0 : index
      %c0_24 = arith.constant 0 : index
      %57 = vector.load %arg5[%c0_23, %c0_24] : memref<16x1xf32, #tpu.memory_space<vmem>>, vector<16x1xf32>
      %58 = vector.shape_cast %57 : vector<16x1xf32> to vector<1x16x1xf32>
      %cst_25 = arith.constant dense<0.000000e+00> : vector<1xf32>
      %59 = vector.multi_reduction <add>, %58, %cst_25 [1, 2] : vector<1x16x1xf32> to vector<1xf32>
      %60 = vector.shape_cast %59 : vector<1xf32> to vector<1x1x1xf32>
      %61 = vector.extract %60[0, 0, 0] : f32 from vector<1x1x1xf32>
      %c0_26 = arith.constant 0 : index
      %c0_27 = arith.constant 0 : index
      %62 = vector.load %arg6[%c0_26, %c0_27] : memref<16x1xf32, #tpu.memory_space<vmem>>, vector<16x1xf32>
      %63 = vector.shape_cast %62 : vector<16x1xf32> to vector<1x16x1xf32>
      %cst_28 = arith.constant dense<0.000000e+00> : vector<1xf32>
      %64 = vector.multi_reduction <add>, %63, %cst_28 [1, 2] : vector<1x16x1xf32> to vector<1xf32>
      %65 = vector.shape_cast %64 : vector<1xf32> to vector<1x1x1xf32>
      %66 = vector.extract %65[0, 0, 0] : f32 from vector<1x1x1xf32>
      %67 = tpu.iota {dimensions = array<i32: 2>} : vector<1x8x128xi32>
      %c0_i32_29 = arith.constant 0 : i32
      %68 = vector.broadcast %c0_i32_29 : i32 to vector<1x8x128xi32>
      %69 = arith.cmpi eq, %67, %68 : vector<1x8x128xi32>
      %c1_i32_30 = arith.constant 1 : i32
      %70 = vector.broadcast %c1_i32_30 : i32 to vector<1x8x128xi32>
      %71 = arith.cmpi eq, %67, %70 : vector<1x8x128xi32>
      %cst_31 = arith.constant 0.000000e+00 : f32
      %72 = vector.broadcast %66 : f32 to vector<1x8x128xf32>
      %73 = vector.broadcast %cst_31 : f32 to vector<1x8x128xf32>
      %74 = arith.select %71, %72, %73 : vector<1x8x128xi1>, vector<1x8x128xf32>
      %75 = vector.broadcast %61 : f32 to vector<1x8x128xf32>
      %76 = arith.select %69, %75, %74 : vector<1x8x128xi1>, vector<1x8x128xf32>
      %c0_32 = arith.constant 0 : index
      %c0_33 = arith.constant 0 : index
      %c0_34 = arith.constant 0 : index
      %77 = vector.load %arg4[%c0_32, %c0_33, %c0_34] : memref<1x8x128xf32, #tpu.memory_space<vmem>>, vector<1x8x128xf32>
      tpu.vector_store %arg4[%c0_32, %c0_33, %c0_34], %76 {strides = array<i32>} : memref<1x8x128xf32, #tpu.memory_space<vmem>>, vector<1x8x128xf32>,
    } else {
    }
    return
  }
  func.func @transform_0(%arg0: i32, %arg1: i32) -> (i32, i32) {
    %c1_i32 = arith.constant 1 : i32
    %0 = arith.muli %arg0, %c1_i32 : i32
    %1 = arith.addi %0, %arg1 : i32
    %c0_i32 = arith.constant 0 : i32
    %2 = arith.minsi %1, %c0_i32 : i32
    %c0_i32_0 = arith.constant 0 : i32
    %c0_i32_1 = arith.constant 0 : i32
    return %2, %c0_i32_0 : i32, i32
  }
  func.func @transform_1(%arg0: i32, %arg1: i32) -> (i32, i32) {
    %c1_i32 = arith.constant 1 : i32
    %0 = arith.muli %arg0, %c1_i32 : i32
    %1 = arith.addi %0, %arg1 : i32
    %c0_i32 = arith.constant 0 : i32
    %2 = arith.minsi %1, %c0_i32 : i32
    %c0_i32_0 = arith.constant 0 : i32
    %c0_i32_1 = arith.constant 0 : i32
    return %2, %c0_i32_0 : i32, i32
  }
  func.func @transform_2(%arg0: i32, %arg1: i32) -> (i32, i32, i32) {
    %c0_i32 = arith.constant 0 : i32
    %c0_i32_0 = arith.constant 0 : i32
    %c0_i32_1 = arith.constant 0 : i32
    return %arg0, %c0_i32, %c0_i32_0 : i32, i32, i32
  }
}

</mosaic_0001>

<llo_original>
// kernel: tpu_custom_call.1
$region0: #{tpu_custom_call.1}
  #allocation0 [shape = 'u32[]', space=smem, size = 0x4, offset = 0x4, fixed_abs, tag = 'smem constant byte address 0x4 - core index']
  #allocation1 [shape = 'u32[144,128]{1,0:T(1,128)}', space=vmem, size = 0x12000, scoped, tag = 'internal scratch']
  #allocation2 [shape = 'f32[16,1]{1,0:T(8,128)}', space=vmem, size = 0x2000, scoped, tag = 'scratch operand']
  #allocation3 [shape = 'f32[16,1]{1,0:T(8,128)}', space=vmem, size = 0x2000, scoped, tag = 'scratch operand']
  %s0 = inlined_call_operand.vmem [shape: f32[16,10], index: 0, kind: input, shape index: {}]
  %s1 = inlined_call_operand.vmem [shape: s32[16,1], index: 1, kind: input, shape index: {}]
  %s2 = inlined_call_operand.hbm [shape: f32[1,8,128], index: 2, kind: output, shape index: {}]
  %s3 = sld [smem:[#allocation0]]
  $region26: #{tpu_custom_call.1} parent=0
    _
  %s5 = ssub.s32 1, %s3
  %s6 = scalar_select 0, %s5, %s3
  $region1: #{tpu_custom_call.1} parent=0
    #allocation4 [shape = 'u8[4096]{0}', space=vmem, size = 0x1000, scoped, tag = 'output window, operand 0, single buffered']
    #allocation5 [shape = 's32[1]{0}', space=sflag, size = 0x4, scoped, tag = 'scoped memory for tpu_custom_call.1']
    %7 = vsyncpa [#allocation5], 0
    // Predicated region
    $region2: #{tpu_custom_call.1} parent=1 // pred_check
      _
    $region3: #{tpu_custom_call.1} parent=1 // pred_check_branch
      %9 = sbr.rel (0) target = $region5
    $region4: #{tpu_custom_call.1} parent=1 // pred_region
      %s10 = sadd.s32 0, 0
      %p11 = scmp.lt.s32.totalorder %s10, 0
      %s12 = scalar_select %p11, %s10, 0
      %s13 = smul.u32 2, %s12
      %p14 = scmp.lt.s32.totalorder %s13, 1
      %s15 = scalar_select %p14, %s13, 1
      %s16 = smul.addr %s15, 8
      %s17 = scalar_lea.vmem %s0, %s16
      %s18 = sadd.s32 0, 0
      %p19 = scmp.lt.s32.totalorder %s18, 0
      %s20 = scalar_select %p19, %s18, 0
      %s21 = smul.u32 2, %s20
    $region5: #{tpu_custom_call.1} parent=1 // pred_fallthru
      _
    // Predicated region
    $region6: #{tpu_custom_call.1} parent=1 // pred_check
      _
    $region7: #{tpu_custom_call.1} parent=1 // pred_check_branch
      %23 = sbr.rel (0) target = $region9
    $region8: #{tpu_custom_call.1} parent=1 // pred_region
      %s24 = sadd.s32 0, 0
      %p25 = scmp.lt.s32.totalorder %s24, 0
      %s26 = scalar_select %p25, %s24, 0
      %s27 = smul.u32 2, %s26
      %p28 = scmp.lt.s32.totalorder %s27, 1
      %s29 = scalar_select %p28, %s27, 1
      %s30 = smul.addr %s29, 8
      %s31 = scalar_lea.vmem %s1, %s30
      %s32 = sadd.s32 0, 0
      %p33 = scmp.lt.s32.totalorder %s32, 0
      %s34 = scalar_select %p33, %s32, 0
      %s35 = smul.u32 2, %s34
    $region9: #{tpu_custom_call.1} parent=1 // pred_fallthru
      _
    %s36 = sadd.s32 0, 0
    %p37 = scmp.lt.s32.totalorder %s36, 0
    %s38 = scalar_select %p37, %s36, 0
    %s39 = smul.u32 2, %s38
    %p40 = scmp.lt.s32.totalorder %s39, 1
    %s41 = scalar_select %p40, %s39, 1
    %s42 = smul.addr %s41, 8
    %s43 = scalar_lea.vmem %s0, %s42
    %s44 = sadd.s32 0, 0
    %p45 = scmp.lt.s32.totalorder %s44, 0
    %s46 = scalar_select %p45, %s44, 0
    %s47 = smul.u32 2, %s46
    %p48 = scmp.lt.s32.totalorder %s47, 1
    %s49 = scalar_select %p48, %s47, 1
    %s50 = smul.addr %s49, 8
    %s51 = scalar_lea.vmem %s1, %s50
    %s52 = sadd.s32 0, 0
    %p53 = scmp.lt.s32.totalorder %s52, 0
    %s54 = scalar_select %p53, %s52, 0
    %s55 = smul.u32 2, %s54
    %p56 = scmp.lt.s32.totalorder %s55, 1
    %s57 = scalar_select %p56, %s55, 1
    %s58 = smul.addr %s57, 8
    %s59 = scalar_lea.vmem %s0, %s58
    %s60 = sadd.s32 0, 0
    %p61 = scmp.lt.s32.totalorder %s60, 0
    %s62 = scalar_select %p61, %s60, 0
    %s63 = smul.u32 2, %s62
    %s64 = sadd.s32 0, 0
    %p65 = scmp.lt.s32.totalorder %s64, 0
    %s66 = scalar_select %p65, %s64, 0
    %s67 = smul.u32 2, %s66
    %p68 = scmp.lt.s32.totalorder %s67, 1
    %s69 = scalar_select %p68, %s67, 1
    %s70 = smul.addr %s69, 8
    %s71 = scalar_lea.vmem %s1, %s70
    %s72 = sadd.s32 0, 0
    %p73 = scmp.lt.s32.totalorder %s72, 0
    %s74 = scalar_select %p73, %s72, 0
    %s75 = smul.u32 2, %s74
    %p76 = scmp.eq.s32.totalorder 0, 0
    // Predicated region
    $region10: #{tpu_custom_call.1} parent=1 // pred_check
      %p77 = pneg %p76
    $region11: #{tpu_custom_call.1} parent=1 // pred_check_branch
      %79 = sbr.rel (%p77) target = $region13
    $region12: #{tpu_custom_call.1} parent=1 // pred_region
      %vm80 = vcmask 7168
      %81 = vst.msk [vmem:[#allocation2] sm:$0xff] %vm80, 0.0
      %82 = vst.msk [vmem:[#allocation2 + $0x8] sm:$0xff] %vm80, 0.0
      %83 = vst.msk [vmem:[#allocation3] sm:$0xff] %vm80, 0.0
      %84 = vst.msk [vmem:[#allocation3 + $0x8] sm:$0xff] %vm80, 0.0
    $region13: #{tpu_custom_call.1} parent=1 // pred_fallthru
      _
    %v85 = vld [vmem:[%s59] sm:$0xff]
    %v86 = vld [vmem:[%s59 + $0x8] sm:$0xff]
    %v87 = vld [vmem:[%s71] sm:$0xff]
    %v88 = vld [vmem:[%s71 + $0x8] sm:$0xff]
    %vm89 = vcmask 80896
    %v90 = vsel %vm89, %v85, -inf
    %91 = vmax.xlane.f32.xlu0 %v90
    %v92 = vpop.xlane.xlu0 %91
    %v93 = vsel %vm89, %v86, -inf
    %94 = vmax.xlane.f32.xlu0 %v93
    %v95 = vpop.xlane.xlu0 %94
    %v96 = vsub.f32 %v85, %v92
    %v97 = vsub.f32 %v86, %v95
    %v98 = vmul.f32 %v96, 1.442695
    %v99 = vpow.pop %v98
    %v100 = vmul.f32 %v97, 1.442695
    %v101 = vpow.pop %v100
    %v102 = vsel %vm89, %v99, 0.0
    %103 = vadd.xlane.f32.xlu0 %v102
    %v104 = vpop.xlane.xlu0 %103
    %v105 = vsel %vm89, %v101, 0.0
    %106 = vadd.xlane.f32.xlu0 %v105
    %v107 = vpop.xlane.xlu0 %106
    %v108 = vlog2.pop %v104
    %v109 = vmul.f32 %v108, 0.6931472
    %v110 = vlog2.pop %v107
    %v111 = vmul.f32 %v110, 0.6931472
    %v112 = vsub.f32 %v96, %v109
    %v113 = vsub.f32 %v97, %v111
    %v114 = vlaneseq
    %v115 = vand.u32 %v114, 127
    %116 = vset.pattern.permute.xlu0 0
    %117 = vperm.xlu0 %116, %v87
    %v118 = vpop.permute.xlu0 %117
    %119 = vset.pattern.permute.xlu0 0
    %120 = vperm.xlu0 %119, %v88
    %v121 = vpop.permute.xlu0 %120
    %vm122 = vcmp.eq.s32.totalorder %v115, %v118
    %vm123 = vcmp.eq.s32.totalorder %v115, %v121
    %v124 = vsel %vm122, %v112, 0.0
    %v125 = vsel %vm123, %v113, 0.0
    %v126 = vsel %vm89, %v124, 0.0
    %127 = vadd.xlane.f32.xlu0 %v126
    %v128 = vpop.xlane.xlu0 %127
    %v129 = vsel %vm89, %v125, 0.0
    %130 = vadd.xlane.f32.xlu0 %v129
    %v131 = vpop.xlane.xlu0 %130
    %v132 = vmul.f32 %v128, 1.442695
    %v133 = vpow.pop %v132
    %v134 = vmul.f32 %v131, 1.442695
    %v135 = vpow.pop %v134
    %v136 = vsub.f32 1.0, %v133
    %v137 = vsub.f32 1.0, %v135
    %v138 = vmax.f32 %v136, 0.0
    %v139 = vmax.f32 %v137, 0.0
    %v140 = vmul.f32 %v138, %v138
    %v141 = vmul.f32 %v139, %v139
    %s142 = sadd.s32 0, 0
    %s143 = smul.u32 %s142, 16
    %v144 = vlaneseq
    %v145 = vshrl.u32 %v144, 7
    %v146 = vadd.s32 %v145, 8
    %v147 = vstv %s143
    %v148 = vadd.s32 %v147, %v145
    %v149 = vadd.s32 %v147, %v146
    %vm150 = vcmp.ne.s32.totalorder %v87, 4294967196
    %vm151 = vcmp.ne.s32.totalorder %v88, 4294967196
    %vm152 = vcmp.lt.s32.totalorder %v148, 16
    %vm153 = vcmp.lt.s32.totalorder %v149, 16
    %vm154 = vmand %vm150, %vm152
    %vm155 = vmand %vm151, %vm153
    %v156 = vmul.f32 %v140, %v128
    %v157 = vmul.f32 %v141, %v131
    %v158 = vsub.f32 0.0, %v156
    %v159 = vsub.f32 0.0, %v157
    %v160 = vsel %vm154, %v158, 0.0
    %v161 = vsel %vm155, %v159, 0.0
    %v162 = vld [vmem:[#allocation2] sm:$0xff]
    %v163 = vld [vmem:[#allocation2 + $0x8] sm:$0xff]
    %v164 = vadd.f32 %v162, %v160
    %v165 = vadd.f32 %v163, %v161
    %vm166 = vcmask 7168
    %167 = vst.msk [vmem:[#allocation2] sm:$0xff] %vm166, %v164
    %168 = vst.msk [vmem:[#allocation2 + $0x8] sm:$0xff] %vm166, %v165
    %v169 = vld [vmem:[#allocation3] sm:$0xff]
    %v170 = vld [vmem:[#allocation3 + $0x8] sm:$0xff]
    %v171 = vsel %vm154, 1, 0
    %v172 = vsel %vm155, 1, 0
    %v173 = vcvt.s32.f32 %v171
    %v174 = vcvt.s32.f32 %v172
    %v175 = vadd.f32 %v169, %v173
    %v176 = vadd.f32 %v170, %v174
    %177 = vst.msk [vmem:[#allocation3] sm:$0xff] %vm166, %v175
    %178 = vst.msk [vmem:[#allocation3 + $0x8] sm:$0xff] %vm166, %v176
    // Predicated region
    $region14: #{tpu_custom_call.1} parent=1 // pred_check
      %p179 = pneg %p76
    $region15: #{tpu_custom_call.1} parent=1 // pred_check_branch
      %181 = sbr.rel (%p179) target = $region17
    $region16: #{tpu_custom_call.1} parent=1 // pred_region
      %v182 = vld [vmem:[#allocation2] sm:$0xff]
      %v183 = vld [vmem:[#allocation2 + $0x8] sm:$0xff]
      %v184 = vsel %vm166, %v182, 0.0
      %v185 = vsel %vm166, %v183, 0.0
      %v186 = vadd.f32 %v184, %v185
      %187 = vadd.xlane.f32.xlu0 %v186
      %v188 = vpop.xlane.xlu0 %187
      %v189 = vrot.slane %v188, 4
      %v190 = vadd.f32 %v188, %v189
      %v191 = vrot.slane %v190, 2
      %v192 = vadd.f32 %v190, %v191
      %v193 = vrot.slane %v192, 1
      %v194 = vadd.f32 %v192, %v193
      %s195 = vtos %v194
      %v196 = vld [vmem:[#allocation3] sm:$0xff]
      %v197 = vld [vmem:[#allocation3 + $0x8] sm:$0xff]
      %v198 = vsel %vm166, %v196, 0.0
      %v199 = vsel %vm166, %v197, 0.0
      %v200 = vadd.f32 %v198, %v199
      %201 = vadd.xlane.f32.xlu0 %v200
      %v202 = vpop.xlane.xlu0 %201
      %v203 = vrot.slane %v202, 4
      %v204 = vadd.f32 %v202, %v203
      %v205 = vrot.slane %v204, 2
      %v206 = vadd.f32 %v204, %v205
      %v207 = vrot.slane %v206, 1
      %v208 = vadd.f32 %v206, %v207
      %s209 = vtos %v208
      %vm210 = vcmp.eq.s32.totalorder %v115, 0
      %vm211 = vcmp.eq.s32.totalorder %v115, 1
      %v212 = vstv %s209
      %v213 = vsel %vm211, %v212, 0.0
      %v214 = vstv %s195
      %v215 = vsel %vm210, %v214, %v213
      %216 = vst [vmem:[#allocation4] sm:$0xff] %v215
    $region17: #{tpu_custom_call.1} parent=1 // pred_fallthru
      _
    // Predicated region
    $region18: #{tpu_custom_call.1} parent=1 // pred_check
      _
    $region19: #{tpu_custom_call.1} parent=1 // pred_check_branch
      %218 = sbr.rel (0) target = $region21
    $region20: #{tpu_custom_call.1} parent=1 // pred_region
      %s220 = ssub.s32 128, 128
      %221 = vsyncadd [#allocation5], %s220
      %s223 = sshll.u32 [#allocation4], 4
      %s224 = int_to_ptr.vmem [resolvable:$true] %s223
      %226 = dma.vmem_to_hbm [thread:$0]  %s224, 128, %s2, [#allocation5]
    $region21: #{tpu_custom_call.1} parent=1 // pred_fallthru
      _
    // Predicated region
    $region22: #{tpu_custom_call.1} parent=1 // pred_check
      _
    $region23: #{tpu_custom_call.1} parent=1 // pred_check_branch
      %228 = sbr.rel (0) target = $region25
    $region24: #{tpu_custom_call.1} parent=1 // pred_region
      %229 = dma.done [#allocation5], 128
    $region25: #{tpu_custom_call.1} parent=1 // pred_fallthru
      _
    %230 = vsyncpa [#allocation5], 1

</llo_original>
